<compile_context>
chip_gen: v7x
topology: tpu7x:2x2x1
jax: 0.10.0
libtpu: 0.0.40
codegen_flags: <defaults>
</compile_context>

<pallas_src>
import jax
import jax.numpy as jnp
from jax.experimental import pallas as pl
from jax.experimental.pallas import tpu as pltpu

INV_SQRT2 = 0.7071067811865476
SQRT_2_OVER_PI = 0.7978845608028654


# ----------------------------------------------------------------------------
# Per-chip configuration
# ----------------------------------------------------------------------------
def _chip_generation():
    """Best-effort chip generation from device_kind; conservative fallback."""
    try:
        kind = jax.devices()[0].device_kind.lower()
    except Exception:
        return "unknown"
    if "v5 lite" in kind or "v5e" in kind or "v5lite" in kind:
        return "v5e"
    if "v6" in kind:
        return "v6e"
    if "v7" in kind or "7x" in kind:
        return "v7x"
    return "unknown"


#             tile_m, vmem_limit_bytes, bf16 elementwise (native bf16 VALU)
_TILE_CFG = {
    "v5e":     (8192,  100 << 20,        False),   # no bf16 VALU/EUP
    "v6e":     (8192,  100 << 20,        True),
    "v7x":     (2048,  None,             True),    # 64 MiB physical VMEM
    "unknown": (4096,  None,             False),
}


def _default_config(gelu):
    gen = _chip_generation()
    tile_m, vmem_limit, bf16_ok = _TILE_CFG.get(gen, _TILE_CFG["unknown"])
    # bf16 elementwise only for the tanh path; exact-erf stays f32 for parity.
    act_dtype = jnp.bfloat16 if (bf16_ok and gelu == "tanh") else jnp.float32
    return gen, tile_m, vmem_limit, act_dtype


# ----------------------------------------------------------------------------
# GELU variants
# ----------------------------------------------------------------------------
def _gelu_erf(v):
    # PyTorch nn.GELU default (approximate='none'): 0.5*x*(1+erf(x/sqrt(2)))
    return 0.5 * v * (1.0 + jax.lax.erf(v * INV_SQRT2))


def _gelu_tanh(v):
    # tanh approximation: transcendental goes to the EUP slot.
    return 0.5 * v * (1.0 + jnp.tanh(SQRT_2_OVER_PI *
                                     (v + 0.044715 * (v * v * v))))


# ----------------------------------------------------------------------------
# Kernel
# ----------------------------------------------------------------------------
def _make_kernel(act_dtype, gelu_fn):
    def kernel(x_ref,
               w1_ref, b1_ref,
               w2_ref, b2_ref,
               w3_ref, b3_ref,
               w4_ref, b4_ref,
               o_ref):
        # x tile arrives f32 from HBM; cast to bf16 right before the MXU.
        x = x_ref[...].astype(jnp.bfloat16)
        h = jnp.dot(x, w1_ref[...],
                    preferred_element_type=jnp.float32) + b1_ref[...]
        h = gelu_fn(h.astype(act_dtype))
        h = jnp.dot(h.astype(jnp.bfloat16), w2_ref[...],
                    preferred_element_type=jnp.float32) + b2_ref[...]
        h = gelu_fn(h.astype(act_dtype))
        h = jnp.dot(h.astype(jnp.bfloat16), w3_ref[...],
                    preferred_element_type=jnp.float32) + b3_ref[...]
        h = gelu_fn(h.astype(act_dtype))
        o_ref[...] = (jnp.dot(h.astype(jnp.bfloat16), w4_ref[...],
                              preferred_element_type=jnp.float32)
                      + b4_ref[...]).astype(o_ref.dtype)
    return kernel


# ----------------------------------------------------------------------------
# Wrapper
# ----------------------------------------------------------------------------
def mlp_encoder_forward(x, params, *, gelu="tanh", tile_m=None,
                        act_dtype=None, vmem_limit_bytes=None):
    """x: (B, C, H, W) float32 -> (B, C, latent_dim) float32."""
    B, C, H, W = x.shape
    M = B * C
    F_in = H * W

    (w1, b1), (w2, b2), (w3, b3), (w4, b4) = params
    latent_dim = w4.shape[1]
    dims = [F_in, w1.shape[1], w2.shape[1], w3.shape[1], latent_dim]

    _, cfg_tile, cfg_vmem, cfg_act = _default_config(gelu)
    if tile_m is None:
        tile_m = cfg_tile
    if vmem_limit_bytes is None:
        vmem_limit_bytes = cfg_vmem
    if act_dtype is None:
        act_dtype = cfg_act
    gelu_fn = _gelu_tanh if gelu == "tanh" else _gelu_erf

    # No wrapper-side dtype cast / pad of x: reshape is a metadata-only view.
    x2d = x.reshape(M, F_in)
    w1b, w2b, w3b, w4b = (w.astype(jnp.bfloat16) for w in (w1, w2, w3, w4))

    # Row tile: whole M if it fits in one block, else a sublane-aligned tile
    # with a ragged (Pallas-masked) last grid step.
    if M <= tile_m:
        tm = M
    else:
        tm = max(8, (tile_m // 8) * 8)
    grid = (pl.cdiv(M, tm),)

    # Advisory cost estimate for XLA's scheduler.
    flops = 2 * M * sum(dims[i] * dims[i + 1] for i in range(4))
    transcendentals = M * (dims[1] + dims[2] + dims[3])
    bytes_accessed = (
        x2d.size * 4                                     # f32 input read
        + M * latent_dim * 4                             # f32 output write
        + sum(w.size * 2 for w in (w1b, w2b, w3b, w4b))  # bf16 weights
        + sum(b.size * 4 for b in (b1, b2, b3, b4)))     # f32 biases

    cp_kwargs = dict(dimension_semantics=("parallel",))
    if vmem_limit_bytes is not None:
        cp_kwargs["vmem_limit_bytes"] = vmem_limit_bytes

    const = lambda i: (0, 0)  # weights/biases resident across all grid steps

    out = pl.pallas_call(
        _make_kernel(act_dtype, gelu_fn),
        out_shape=jax.ShapeDtypeStruct((M, latent_dim), jnp.float32),
        grid=grid,
        in_specs=[
            pl.BlockSpec((tm, F_in), lambda i: (i, 0)),
            pl.BlockSpec(w1b.shape, const), pl.BlockSpec(b1.shape, const),
            pl.BlockSpec(w2b.shape, const), pl.BlockSpec(b2.shape, const),
            pl.BlockSpec(w3b.shape, const), pl.BlockSpec(b3.shape, const),
            pl.BlockSpec(w4b.shape, const), pl.BlockSpec(b4.shape, const),
        ],
        out_specs=pl.BlockSpec((tm, latent_dim), lambda i: (i, 0)),
        compiler_params=pltpu.CompilerParams(**cp_kwargs),
        cost_estimate=pl.CostEstimate(flops=flops,
                                      transcendentals=transcendentals,
                                      bytes_accessed=bytes_accessed),
    )(x2d, w1b, b1, w2b, b2, w3b, b3, w4b, b4)

    return out.reshape(B, C, latent_dim)


# ----------------------------------------------------------------------------
# Params + references
# ----------------------------------------------------------------------------
def init_params(key, size, latent_dim):
    """PyTorch-Linear-shaped params: dims size^2 -> 8ld -> 4ld -> 2ld -> ld.
    Weights stored pre-transposed as (in, out); biases as (1, out)."""
    dims = [size * size, latent_dim * 8, latent_dim * 4, latent_dim * 2,
            latent_dim]
    params = []
    for i in range(4):
        fan_in, fan_out = dims[i], dims[i + 1]
        key, kw, kb = jax.random.split(key, 3)
        bound = 1.0 / jnp.sqrt(fan_in)
        w = jax.random.uniform(kw, (fan_in, fan_out), jnp.float32, -bound, bound)
        b = jax.random.uniform(kb, (1, fan_out), jnp.float32, -bound, bound)
        params.append((w, b))
    return params


def reference_forward_f32(x, params):
    """Full-f32, exact-erf PyTorch-equivalent reference."""
    B, C, H, W = x.shape
    h = x.reshape(B, C, H * W)
    (w1, b1), (w2, b2), (w3, b3), (w4, b4) = params
    h = _gelu_erf(h @ w1 + b1)
    h = _gelu_erf(h @ w2 + b2)
    h = _gelu_erf(h @ w3 + b3)
    return h @ w4 + b4


def reference_forward_mixed(x, params, gelu_fn, act_dtype):
    """Reference matching the kernel's bf16-operand / f32-accum precision."""
    B, C, H, W = x.shape
    h = x.reshape(B * C, H * W).astype(jnp.bfloat16)
    for i, (w, b) in enumerate(params):
        y = jnp.dot(h, w.astype(jnp.bfloat16),
                    preferred_element_type=jnp.float32) + b
        if i < 3:
            h = gelu_fn(y.astype(act_dtype)).astype(jnp.bfloat16)
        else:
            h = y
    return h.astype(jnp.float32).reshape(B, C, -1)


# ----------------------------------------------------------------------------
# Main
# ----------------------------------------------------------------------------
if __name__ == "__main__":
    # Small shapes consistent with the module: size=16 -> in_features = 256.
    B, C, size, latent_dim = 2, 4, 16, 16

    key = jax.random.PRNGKey(0)
    key, kx = jax.random.split(key)
    x = jax.random.normal(kx, (B, C, size, size), jnp.float32)
    params = init_params(key, size, latent_dim)

    y_f32 = reference_forward_f32(x, params)

    # 1) Default perf-tuned path: tanh-approx GELU, bf16 elementwise where
    #    the chip has native bf16 VALU (v6e/v7x), f32 elsewhere.
    _, _, _, act_dtype = _default_config("tanh")
    y = mlp_encoder_forward(x, params, gelu="tanh")
    y = jax.block_until_ready(y)
    assert y.shape == (B, C, latent_dim)
    y_mixed = reference_forward_mixed(x, params, _gelu_tanh, act_dtype)
    assert jnp.allclose(y, y_mixed, atol=3e-2, rtol=3e-2), \
        "tanh kernel mismatch vs matching mixed-precision reference"
    assert jnp.allclose(y, y_f32, atol=1e-1, rtol=1e-1), \
        "tanh kernel mismatch vs f32 exact-GELU reference"

    # 2) Semantics-faithful path: exact erf GELU in f32 (only bf16 matmul
    #    operands deviate from the PyTorch reference).
    y_erf = mlp_encoder_forward(x, params, gelu="erf")
    y_erf = jax.block_until_ready(y_erf)
    y_mixed_erf = reference_forward_mixed(x, params, _gelu_erf, jnp.float32)
    assert jnp.allclose(y_erf, y_mixed_erf, atol=3e-3, rtol=3e-3), \
        "erf kernel mismatch vs matching mixed-precision reference"
    assert jnp.allclose(y_erf, y_f32, atol=1e-1, rtol=1e-1), \
        "erf kernel mismatch vs f32 reference"

    print("KERNEL_OK")
</pallas_src>

<mosaic_0001>
module attributes {stable_mosaic.version = 11 : i64} {
  func.func @kernel(%arg0: i32, %arg1: memref<8x256xf32, #tpu.memory_space<vmem>>, %arg2: memref<256x128xbf16, #tpu.memory_space<vmem>>, %arg3: memref<1x128xf32, #tpu.memory_space<vmem>>, %arg4: memref<128x64xbf16, #tpu.memory_space<vmem>>, %arg5: memref<1x64xf32, #tpu.memory_space<vmem>>, %arg6: memref<64x32xbf16, #tpu.memory_space<vmem>>, %arg7: memref<1x32xf32, #tpu.memory_space<vmem>>, %arg8: memref<32x16xbf16, #tpu.memory_space<vmem>>, %arg9: memref<1x16xf32, #tpu.memory_space<vmem>>, %arg10: memref<8x16xf32, #tpu.memory_space<vmem>>) attributes {dimension_semantics = [#tpu.dimension_semantics<parallel>], iteration_bounds = array<i64: 1>, scalar_prefetch = 0 : i64, scratch_operands = 0 : i64, tpu.core_type = #tpu.core_type<tc>, window_params = [{transform_indices = @transform_0, window_bounds = array<i64: 8, 256>}, {pipeline_mode = #tpu.pipeline_mode<synchronous>, transform_indices = @transform_1, window_bounds = array<i64: 256, 128>}, {pipeline_mode = #tpu.pipeline_mode<synchronous>, transform_indices = @transform_2, window_bounds = array<i64: 1, 128>}, {pipeline_mode = #tpu.pipeline_mode<synchronous>, transform_indices = @transform_3, window_bounds = array<i64: 128, 64>}, {pipeline_mode = #tpu.pipeline_mode<synchronous>, transform_indices = @transform_4, window_bounds = array<i64: 1, 64>}, {pipeline_mode = #tpu.pipeline_mode<synchronous>, transform_indices = @transform_5, window_bounds = array<i64: 64, 32>}, {pipeline_mode = #tpu.pipeline_mode<synchronous>, transform_indices = @transform_6, window_bounds = array<i64: 1, 32>}, {pipeline_mode = #tpu.pipeline_mode<synchronous>, transform_indices = @transform_7, window_bounds = array<i64: 32, 16>}, {pipeline_mode = #tpu.pipeline_mode<synchronous>, transform_indices = @transform_8, window_bounds = array<i64: 1, 16>}, {transform_indices = @transform_9, window_bounds = array<i64: 8, 16>}]} {
    %c0 = arith.constant 0 : index
    %c0_0 = arith.constant 0 : index
    %0 = vector.load %arg1[%c0, %c0_0] : memref<8x256xf32, #tpu.memory_space<vmem>>, vector<8x256xf32>
    %1 = arith.truncf %0 : vector<8x256xf32> to vector<8x256xbf16>
    %c0_1 = arith.constant 0 : index
    %c0_2 = arith.constant 0 : index
    %2 = vector.load %arg2[%c0_1, %c0_2] : memref<256x128xbf16, #tpu.memory_space<vmem>>, vector<256x128xbf16>
    %cst = arith.constant dense<0.000000e+00> : vector<8x128xf32>
    %3 = tpu.matmul %1, %2, %cst {dimension_numbers = #tpu.dot_dimension_numbers<[1], [0], [0], [1], [0, 0, 1, 1], [], []>} : vector<8x256xbf16>, vector<256x128xbf16>, vector<8x128xf32> -> vector<8x128xf32>
    %c0_3 = arith.constant 0 : index
    %c0_4 = arith.constant 0 : index
    %4 = vector.load %arg3[%c0_3, %c0_4] : memref<1x128xf32, #tpu.memory_space<vmem>>, vector<1x128xf32>
    %5 = vector.broadcast %4 : vector<1x128xf32> to vector<8x128xf32>
    %6 = arith.addf %3, %5 : vector<8x128xf32>
    %cst_5 = arith.constant 5.000000e-01 : f32
    %7 = vector.broadcast %cst_5 : f32 to vector<8x128xf32>
    %8 = arith.mulf %7, %6 : vector<8x128xf32>
    %9 = arith.mulf %6, %6 : vector<8x128xf32>
    %10 = arith.mulf %9, %6 : vector<8x128xf32>
    %cst_6 = arith.constant 4.471500e-02 : f32
    %11 = vector.broadcast %cst_6 : f32 to vector<8x128xf32>
    %12 = arith.mulf %11, %10 : vector<8x128xf32>
    %13 = arith.addf %6, %12 : vector<8x128xf32>
    %cst_7 = arith.constant 0.797884583 : f32
    %14 = vector.broadcast %cst_7 : f32 to vector<8x128xf32>
    %15 = arith.mulf %14, %13 : vector<8x128xf32>
    %16 = math.tanh %15 : vector<8x128xf32>
    %cst_8 = arith.constant 1.000000e+00 : f32
    %17 = vector.broadcast %cst_8 : f32 to vector<8x128xf32>
    %18 = arith.addf %17, %16 : vector<8x128xf32>
    %19 = arith.mulf %8, %18 : vector<8x128xf32>
    %20 = arith.truncf %19 : vector<8x128xf32> to vector<8x128xbf16>
    %c0_9 = arith.constant 0 : index
    %c0_10 = arith.constant 0 : index
    %21 = vector.load %arg4[%c0_9, %c0_10] : memref<128x64xbf16, #tpu.memory_space<vmem>>, vector<128x64xbf16>
    %cst_11 = arith.constant dense<0.000000e+00> : vector<8x64xf32>
    %22 = tpu.matmul %20, %21, %cst_11 {dimension_numbers = #tpu.dot_dimension_numbers<[1], [0], [0], [1], [0, 0, 1, 1], [], []>} : vector<8x128xbf16>, vector<128x64xbf16>, vector<8x64xf32> -> vector<8x64xf32>
    %c0_12 = arith.constant 0 : index
    %c0_13 = arith.constant 0 : index
    %23 = vector.load %arg5[%c0_12, %c0_13] : memref<1x64xf32, #tpu.memory_space<vmem>>, vector<1x64xf32>
    %24 = vector.broadcast %23 : vector<1x64xf32> to vector<8x64xf32>
    %25 = arith.addf %22, %24 : vector<8x64xf32>
    %cst_14 = arith.constant 5.000000e-01 : f32
    %26 = vector.broadcast %cst_14 : f32 to vector<8x64xf32>
    %27 = arith.mulf %26, %25 : vector<8x64xf32>
    %28 = arith.mulf %25, %25 : vector<8x64xf32>
    %29 = arith.mulf %28, %25 : vector<8x64xf32>
    %cst_15 = arith.constant 4.471500e-02 : f32
    %30 = vector.broadcast %cst_15 : f32 to vector<8x64xf32>
    %31 = arith.mulf %30, %29 : vector<8x64xf32>
    %32 = arith.addf %25, %31 : vector<8x64xf32>
    %cst_16 = arith.constant 0.797884583 : f32
    %33 = vector.broadcast %cst_16 : f32 to vector<8x64xf32>
    %34 = arith.mulf %33, %32 : vector<8x64xf32>
    %35 = math.tanh %34 : vector<8x64xf32>
    %cst_17 = arith.constant 1.000000e+00 : f32
    %36 = vector.broadcast %cst_17 : f32 to vector<8x64xf32>
    %37 = arith.addf %36, %35 : vector<8x64xf32>
    %38 = arith.mulf %27, %37 : vector<8x64xf32>
    %39 = arith.truncf %38 : vector<8x64xf32> to vector<8x64xbf16>
    %c0_18 = arith.constant 0 : index
    %c0_19 = arith.constant 0 : index
    %40 = vector.load %arg6[%c0_18, %c0_19] : memref<64x32xbf16, #tpu.memory_space<vmem>>, vector<64x32xbf16>
    %cst_20 = arith.constant dense<0.000000e+00> : vector<8x32xf32>
    %41 = tpu.matmul %39, %40, %cst_20 {dimension_numbers = #tpu.dot_dimension_numbers<[1], [0], [0], [1], [0, 0, 1, 1], [], []>} : vector<8x64xbf16>, vector<64x32xbf16>, vector<8x32xf32> -> vector<8x32xf32>
    %c0_21 = arith.constant 0 : index
    %c0_22 = arith.constant 0 : index
    %42 = vector.load %arg7[%c0_21, %c0_22] : memref<1x32xf32, #tpu.memory_space<vmem>>, vector<1x32xf32>
    %43 = vector.broadcast %42 : vector<1x32xf32> to vector<8x32xf32>
    %44 = arith.addf %41, %43 : vector<8x32xf32>
    %cst_23 = arith.constant 5.000000e-01 : f32
    %45 = vector.broadcast %cst_23 : f32 to vector<8x32xf32>
    %46 = arith.mulf %45, %44 : vector<8x32xf32>
    %47 = arith.mulf %44, %44 : vector<8x32xf32>
    %48 = arith.mulf %47, %44 : vector<8x32xf32>
    %cst_24 = arith.constant 4.471500e-02 : f32
    %49 = vector.broadcast %cst_24 : f32 to vector<8x32xf32>
    %50 = arith.mulf %49, %48 : vector<8x32xf32>
    %51 = arith.addf %44, %50 : vector<8x32xf32>
    %cst_25 = arith.constant 0.797884583 : f32
    %52 = vector.broadcast %cst_25 : f32 to vector<8x32xf32>
    %53 = arith.mulf %52, %51 : vector<8x32xf32>
    %54 = math.tanh %53 : vector<8x32xf32>
    %cst_26 = arith.constant 1.000000e+00 : f32
    %55 = vector.broadcast %cst_26 : f32 to vector<8x32xf32>
    %56 = arith.addf %55, %54 : vector<8x32xf32>
    %57 = arith.mulf %46, %56 : vector<8x32xf32>
    %58 = arith.truncf %57 : vector<8x32xf32> to vector<8x32xbf16>
    %c0_27 = arith.constant 0 : index
    %c0_28 = arith.constant 0 : index
    %59 = vector.load %arg8[%c0_27, %c0_28] : memref<32x16xbf16, #tpu.memory_space<vmem>>, vector<32x16xbf16>
    %cst_29 = arith.constant dense<0.000000e+00> : vector<8x16xf32>
    %60 = tpu.matmul %58, %59, %cst_29 {dimension_numbers = #tpu.dot_dimension_numbers<[1], [0], [0], [1], [0, 0, 1, 1], [], []>} : vector<8x32xbf16>, vector<32x16xbf16>, vector<8x16xf32> -> vector<8x16xf32>
    %c0_30 = arith.constant 0 : index
    %c0_31 = arith.constant 0 : index
    %61 = vector.load %arg9[%c0_30, %c0_31] : memref<1x16xf32, #tpu.memory_space<vmem>>, vector<1x16xf32>
    %62 = vector.broadcast %61 : vector<1x16xf32> to vector<8x16xf32>
    %63 = arith.addf %60, %62 : vector<8x16xf32>
    %c0_32 = arith.constant 0 : index
    %c0_33 = arith.constant 0 : index
    %64 = vector.load %arg10[%c0_32, %c0_33] : memref<8x16xf32, #tpu.memory_space<vmem>>, vector<8x16xf32>
    tpu.vector_store %arg10[%c0_32, %c0_33], %63 {strides = array<i32>} : memref<8x16xf32, #tpu.memory_space<vmem>>, vector<8x16xf32>,
    return
  }
  func.func @transform_0(%arg0: i32) -> (i32, i32) {
    %c0_i32 = arith.constant 0 : i32
    %c0_i32_0 = arith.constant 0 : i32
    return %arg0, %c0_i32 : i32, i32
  }
  func.func @transform_1(%arg0: i32) -> (i32, i32) {
    %c0_i32 = arith.constant 0 : i32
    %c0_i32_0 = arith.constant 0 : i32
    %c0_i32_1 = arith.constant 0 : i32
    return %c0_i32, %c0_i32_0 : i32, i32
  }
  func.func @transform_2(%arg0: i32) -> (i32, i32) {
    %c0_i32 = arith.constant 0 : i32
    %c0_i32_0 = arith.constant 0 : i32
    %c0_i32_1 = arith.constant 0 : i32
    return %c0_i32, %c0_i32_0 : i32, i32
  }
  func.func @transform_3(%arg0: i32) -> (i32, i32) {
    %c0_i32 = arith.constant 0 : i32
    %c0_i32_0 = arith.constant 0 : i32
    %c0_i32_1 = arith.constant 0 : i32
    return %c0_i32, %c0_i32_0 : i32, i32
  }
  func.func @transform_4(%arg0: i32) -> (i32, i32) {
    %c0_i32 = arith.constant 0 : i32
    %c0_i32_0 = arith.constant 0 : i32
    %c0_i32_1 = arith.constant 0 : i32
    return %c0_i32, %c0_i32_0 : i32, i32
  }
  func.func @transform_5(%arg0: i32) -> (i32, i32) {
    %c0_i32 = arith.constant 0 : i32
    %c0_i32_0 = arith.constant 0 : i32
    %c0_i32_1 = arith.constant 0 : i32
    return %c0_i32, %c0_i32_0 : i32, i32
  }
  func.func @transform_6(%arg0: i32) -> (i32, i32) {
    %c0_i32 = arith.constant 0 : i32
    %c0_i32_0 = arith.constant 0 : i32
    %c0_i32_1 = arith.constant 0 : i32
    return %c0_i32, %c0_i32_0 : i32, i32
  }
  func.func @transform_7(%arg0: i32) -> (i32, i32) {
    %c0_i32 = arith.constant 0 : i32
    %c0_i32_0 = arith.constant 0 : i32
    %c0_i32_1 = arith.constant 0 : i32
    return %c0_i32, %c0_i32_0 : i32, i32
  }
  func.func @transform_8(%arg0: i32) -> (i32, i32) {
    %c0_i32 = arith.constant 0 : i32
    %c0_i32_0 = arith.constant 0 : i32
    %c0_i32_1 = arith.constant 0 : i32
    return %c0_i32, %c0_i32_0 : i32, i32
  }
  func.func @transform_9(%arg0: i32) -> (i32, i32) {
    %c0_i32 = arith.constant 0 : i32
    %c0_i32_0 = arith.constant 0 : i32
    return %arg0, %c0_i32 : i32, i32
  }
}

</mosaic_0001>

<llo_original>
// kernel: tpu_custom_call.1
$region0: #{tpu_custom_call.1}
  #allocation0 [shape = 'u32[]', space=smem, size = 0x4, offset = 0x4, fixed_abs, tag = 'smem constant byte address 0x4 - core index']
  #allocation1 [shape = 'u32[144,128]{1,0:T(1,128)}', space=vmem, size = 0x12000, scoped, tag = 'internal scratch']
  %s0 = inlined_call_operand.hbm [shape: f32[8,256], index: 0, kind: input, shape index: {}]
  %s1 = inlined_call_operand.vmem [shape: bf16[256,128], index: 1, kind: input, shape index: {}]
  %s2 = inlined_call_operand.vmem [shape: f32[1,128], index: 2, kind: input, shape index: {}]
  %s3 = inlined_call_operand.vmem [shape: bf16[128,64], index: 3, kind: input, shape index: {}]
  %s4 = inlined_call_operand.vmem [shape: f32[1,64], index: 4, kind: input, shape index: {}]
  %s5 = inlined_call_operand.vmem [shape: bf16[64,32], index: 5, kind: input, shape index: {}]
  %s6 = inlined_call_operand.vmem [shape: f32[1,32], index: 6, kind: input, shape index: {}]
  %s7 = inlined_call_operand.vmem [shape: bf16[32,16], index: 7, kind: input, shape index: {}]
  %s8 = inlined_call_operand.vmem [shape: f32[1,16], index: 8, kind: input, shape index: {}]
  %s9 = inlined_call_operand.hbm [shape: f32[8,16], index: 9, kind: output, shape index: {}]
  %s10 = sld [smem:[#allocation0]]
  $region50: #{tpu_custom_call.1} parent=0
    _
  %s12 = ssub.s32 1, %s10
  %s13 = scalar_select 0, %s12, %s10
  $region1: #{tpu_custom_call.1} parent=0
    #allocation2 [shape = 'u8[8192]{0}', space=vmem, size = 0x2000, scoped, tag = 'input window, operand 0, single buffered']
    #allocation3 [shape = 's32[1]{0}', space=sflag, size = 0x4, scoped, tag = 'scoped memory for tpu_custom_call.1']
    #allocation4 [shape = 's32[1]{0}', space=sflag, size = 0x4, scoped, tag = 'scoped memory for tpu_custom_call.1']
    #allocation5 [shape = 'u8[4096]{0}', space=vmem, size = 0x1000, scoped, tag = 'output window, operand 0, single buffered']
    %14 = vsyncpa [#allocation3], 0
    %15 = vsyncpa [#allocation4], 0
    // Predicated region
    $region2: #{tpu_custom_call.1} parent=1 // pred_check
      _
    $region3: #{tpu_custom_call.1} parent=1 // pred_check_branch
      %17 = sbr.rel (0) target = $region5
    $region4: #{tpu_custom_call.1} parent=1 // pred_region
      %s19 = ssub.s32 256, 256
      %20 = vsyncadd [#allocation3], %s19
      %s22 = sshll.u32 [#allocation2], 4
      %s23 = int_to_ptr.vmem [resolvable:$true] %s22
      %25 = dma.hbm_to_vmem [thread:$0]  %s0, 256, %s23, [#allocation3]
    $region5: #{tpu_custom_call.1} parent=1 // pred_fallthru
      _
    // Predicated region
    $region6: #{tpu_custom_call.1} parent=1 // pred_check
      _
    $region7: #{tpu_custom_call.1} parent=1 // pred_check_branch
      %27 = sbr.rel (0) target = $region9
    $region8: #{tpu_custom_call.1} parent=1 // pred_region
      _
    $region9: #{tpu_custom_call.1} parent=1 // pred_fallthru
      _
    // Predicated region
    $region10: #{tpu_custom_call.1} parent=1 // pred_check
      _
    $region11: #{tpu_custom_call.1} parent=1 // pred_check_branch
      %29 = sbr.rel (0) target = $region13
    $region12: #{tpu_custom_call.1} parent=1 // pred_region
      _
    $region13: #{tpu_custom_call.1} parent=1 // pred_fallthru
      _
    // Predicated region
    $region14: #{tpu_custom_call.1} parent=1 // pred_check
      _
    $region15: #{tpu_custom_call.1} parent=1 // pred_check_branch
      %31 = sbr.rel (0) target = $region17
    $region16: #{tpu_custom_call.1} parent=1 // pred_region
      _
    $region17: #{tpu_custom_call.1} parent=1 // pred_fallthru
      _
    // Predicated region
    $region18: #{tpu_custom_call.1} parent=1 // pred_check
      _
    $region19: #{tpu_custom_call.1} parent=1 // pred_check_branch
      %33 = sbr.rel (0) target = $region21
    $region20: #{tpu_custom_call.1} parent=1 // pred_region
      _
    $region21: #{tpu_custom_call.1} parent=1 // pred_fallthru
      _
    // Predicated region
    $region22: #{tpu_custom_call.1} parent=1 // pred_check
      _
    $region23: #{tpu_custom_call.1} parent=1 // pred_check_branch
      %35 = sbr.rel (0) target = $region25
    $region24: #{tpu_custom_call.1} parent=1 // pred_region
      _
    $region25: #{tpu_custom_call.1} parent=1 // pred_fallthru
      _
    // Predicated region
    $region26: #{tpu_custom_call.1} parent=1 // pred_check
      _
    $region27: #{tpu_custom_call.1} parent=1 // pred_check_branch
      %37 = sbr.rel (0) target = $region29
    $region28: #{tpu_custom_call.1} parent=1 // pred_region
      _
    $region29: #{tpu_custom_call.1} parent=1 // pred_fallthru
      _
    // Predicated region
    $region30: #{tpu_custom_call.1} parent=1 // pred_check
      _
    $region31: #{tpu_custom_call.1} parent=1 // pred_check_branch
      %39 = sbr.rel (0) target = $region33
    $region32: #{tpu_custom_call.1} parent=1 // pred_region
      _
    $region33: #{tpu_custom_call.1} parent=1 // pred_fallthru
      _
    // Predicated region
    $region34: #{tpu_custom_call.1} parent=1 // pred_check
      _
    $region35: #{tpu_custom_call.1} parent=1 // pred_check_branch
      %41 = sbr.rel (0) target = $region37
    $region36: #{tpu_custom_call.1} parent=1 // pred_region
      _
    $region37: #{tpu_custom_call.1} parent=1 // pred_fallthru
      _
    // Predicated region
    $region38: #{tpu_custom_call.1} parent=1 // pred_check
      _
    $region39: #{tpu_custom_call.1} parent=1 // pred_check_branch
      %43 = sbr.rel (0) target = $region41
    $region40: #{tpu_custom_call.1} parent=1 // pred_region
      %44 = dma.done [#allocation3], 256
    $region41: #{tpu_custom_call.1} parent=1 // pred_fallthru
      _
    %v46 = vld [vmem:[#allocation2] sm:$0xff]
    %v47 = vld [vmem:[#allocation2 + $0x8] sm:$0xff]
    %v48 = vpack.c.bf16 %v46, %v46
    %v49 = vpack.c.bf16 %v47, %v47
    %v50 = vld [vmem:[%s1] sm:$0xf]
    %v51 = vld [vmem:[%s1 + $0x4] sm:$0xf]
    %v52 = vld [vmem:[%s1 + $0x8] sm:$0xf]
    %v53 = vld [vmem:[%s1 + $0xc] sm:$0xf]
    %v54 = vld [vmem:[%s1 + $0x10] sm:$0xf]
    %v55 = vld [vmem:[%s1 + $0x14] sm:$0xf]
    %v56 = vld [vmem:[%s1 + $0x18] sm:$0xf]
    %v57 = vld [vmem:[%s1 + $0x1c] sm:$0xf]
    %v58 = vld [vmem:[%s1 + $0x20] sm:$0xf]
    %v59 = vld [vmem:[%s1 + $0x24] sm:$0xf]
    %v60 = vld [vmem:[%s1 + $0x28] sm:$0xf]
    %v61 = vld [vmem:[%s1 + $0x2c] sm:$0xf]
    %v62 = vld [vmem:[%s1 + $0x30] sm:$0xf]
    %v63 = vld [vmem:[%s1 + $0x34] sm:$0xf]
    %v64 = vld [vmem:[%s1 + $0x38] sm:$0xf]
    %v65 = vld [vmem:[%s1 + $0x3c] sm:$0xf]
    %v66 = vld [vmem:[%s1 + $0x40] sm:$0xf]
    %v67 = vld [vmem:[%s1 + $0x44] sm:$0xf]
    %v68 = vld [vmem:[%s1 + $0x48] sm:$0xf]
    %v69 = vld [vmem:[%s1 + $0x4c] sm:$0xf]
    %v70 = vld [vmem:[%s1 + $0x50] sm:$0xf]
    %v71 = vld [vmem:[%s1 + $0x54] sm:$0xf]
    %v72 = vld [vmem:[%s1 + $0x58] sm:$0xf]
    %v73 = vld [vmem:[%s1 + $0x5c] sm:$0xf]
    %v74 = vld [vmem:[%s1 + $0x60] sm:$0xf]
    %v75 = vld [vmem:[%s1 + $0x64] sm:$0xf]
    %v76 = vld [vmem:[%s1 + $0x68] sm:$0xf]
    %v77 = vld [vmem:[%s1 + $0x6c] sm:$0xf]
    %v78 = vld [vmem:[%s1 + $0x70] sm:$0xf]
    %v79 = vld [vmem:[%s1 + $0x74] sm:$0xf]
    %v80 = vld [vmem:[%s1 + $0x78] sm:$0xf]
    %v81 = vld [vmem:[%s1 + $0x7c] sm:$0xf]
    %v82 = vld [vmem:[%s2] sm:$0x1]
    %v84 = vlaneseq
    %v85 = vshrl.u32 %v84, 7
    %v86 = vsub.s32 0, %v85
    %v87 = vrot.slane %v82, %v86
    %v121 = vunpack.c.l.b16 %v50
    %v122 = vunpack.c.l.b16 %v51
    %v123 = vunpack.c.l.b16 %v52
    %v124 = vunpack.c.l.b16 %v53
    %v125 = vunpack.c.l.b16 %v54
    %v126 = vunpack.c.l.b16 %v55
    %v127 = vunpack.c.l.b16 %v56
    %v128 = vunpack.c.l.b16 %v57
    %v129 = vunpack.c.l.b16 %v58
    %v130 = vunpack.c.l.b16 %v59
    %v131 = vunpack.c.l.b16 %v60
    %v132 = vunpack.c.l.b16 %v61
    %v133 = vunpack.c.l.b16 %v62
    %v134 = vunpack.c.l.b16 %v63
    %v135 = vunpack.c.l.b16 %v64
    %v136 = vunpack.c.l.b16 %v65
    %v137 = vunpack.c.l.b16 %v66
    %v138 = vunpack.c.l.b16 %v67
    %v139 = vunpack.c.l.b16 %v68
    %v140 = vunpack.c.l.b16 %v69
    %v141 = vunpack.c.l.b16 %v70
    %v142 = vunpack.c.l.b16 %v71
    %v143 = vunpack.c.l.b16 %v72
    %v144 = vunpack.c.l.b16 %v73
    %v145 = vunpack.c.l.b16 %v74
    %v146 = vunpack.c.l.b16 %v75
    %v147 = vunpack.c.l.b16 %v76
    %v148 = vunpack.c.l.b16 %v77
    %v149 = vunpack.c.l.b16 %v78
    %v150 = vunpack.c.l.b16 %v79
    %v151 = vunpack.c.l.b16 %v80
    %v152 = vunpack.c.l.b16 %v81
    %v153 = vpack.c.b16 %v122, %v121
    %v154 = vpack.c.b16 %v124, %v123
    %v155 = vpack.c.b16 %v126, %v125
    %v156 = vpack.c.b16 %v128, %v127
    %v157 = vpack.c.b16 %v130, %v129
    %v158 = vpack.c.b16 %v132, %v131
    %v159 = vpack.c.b16 %v134, %v133
    %v160 = vpack.c.b16 %v136, %v135
    %v161 = vpack.c.b16 %v138, %v137
    %v162 = vpack.c.b16 %v140, %v139
    %v163 = vpack.c.b16 %v142, %v141
    %v164 = vpack.c.b16 %v144, %v143
    %v165 = vpack.c.b16 %v146, %v145
    %v166 = vpack.c.b16 %v148, %v147
    %v167 = vpack.c.b16 %v150, %v149
    %v168 = vpack.c.b16 %v152, %v151
    %185 = vmatprep.subr.bf16.mxu0 0
    %186 = vmatpush1.bf16.msra.mxu0 %v153
    %187 = vmatprep.subr.bf16.mxu0 0
    %188 = vmatpush1.bf16.msra.mxu0 %v154
    %189 = vmatprep.subr.bf16.mxu0 0
    %190 = vmatpush1.bf16.msra.mxu0 %v155
    %191 = vmatprep.subr.bf16.mxu0 0
    %192 = vmatpush1.bf16.msra.mxu0 %v156
    %193 = vmatprep.subr.bf16.mxu0 0
    %194 = vmatpush1.bf16.msra.mxu0 %v157
    %195 = vmatprep.subr.bf16.mxu0 0
    %196 = vmatpush1.bf16.msra.mxu0 %v158
    %197 = vmatprep.subr.bf16.mxu0 0
    %198 = vmatpush1.bf16.msra.mxu0 %v159
    %199 = vmatprep.subr.bf16.mxu0 0
    %200 = vmatpush1.bf16.msra.mxu0 %v160
    %201 = vmatprep.subr.bf16.mxu0 0
    %202 = vmatpush1.bf16.msra.mxu0 %v161
    %203 = vmatprep.subr.bf16.mxu0 0
    %204 = vmatpush1.bf16.msra.mxu0 %v162
    %205 = vmatprep.subr.bf16.mxu0 0
    %206 = vmatpush1.bf16.msra.mxu0 %v163
    %207 = vmatprep.subr.bf16.mxu0 0
    %208 = vmatpush1.bf16.msra.mxu0 %v164
    %209 = vmatprep.subr.bf16.mxu0 0
    %210 = vmatpush1.bf16.msra.mxu0 %v165
    %211 = vmatprep.subr.bf16.mxu0 0
    %212 = vmatpush1.bf16.msra.mxu0 %v166
    %213 = vmatprep.subr.bf16.mxu0 0
    %214 = vmatpush1.bf16.msra.mxu0 %v167
    %215 = vmatprep.subr.bf16.mxu0 0
    %216 = vmatpush1.bf16.msra.mxu0 %v168
    %217 = vmatprep.mubr.bf16.mxu0 %v49
    %218 = vmatmul.mubr.bf16.gmra.mrb[0].mxu0 %v48
    %v219 = vpop.f32.mrb[0].mxu0
    %v220 = vadd.f32 %v87, %v219
    %v221 = vpop.f32.mrb[0].mxu0
    %v222 = vpop.f32.mrb[0].mxu0
    %v223 = vpop.f32.mrb[0].mxu0
    %224 = vdwg.mxu0
    %v225 = vmul.f32 %v220, 0.5
    %v226 = vmul.f32 %v220, %v220
    %v227 = vmul.f32 %v226, %v220
    %v228 = vmul.f32 %v227, 0.044715
    %v229 = vadd.f32 %v220, %v228
    %v230 = vmul.f32 %v229, 0.7978846
    %v231 = vtanh.pop %v230
    %v232 = vadd.f32 %v231, 1.0
    %v233 = vmul.f32 %v225, %v232
    %v234 = vpack.c.bf16 %v233, %v233
    %v235 = vld [vmem:[%s3] sm:$0xf]
    %v236 = vld [vmem:[%s3 + $0x4] sm:$0xf]
    %v237 = vld [vmem:[%s3 + $0x8] sm:$0xf]
    %v238 = vld [vmem:[%s3 + $0xc] sm:$0xf]
    %v239 = vld [vmem:[%s3 + $0x10] sm:$0xf]
    %v240 = vld [vmem:[%s3 + $0x14] sm:$0xf]
    %v241 = vld [vmem:[%s3 + $0x18] sm:$0xf]
    %v242 = vld [vmem:[%s3 + $0x1c] sm:$0xf]
    %v243 = vld [vmem:[%s3 + $0x20] sm:$0xf]
    %v244 = vld [vmem:[%s3 + $0x24] sm:$0xf]
    %v245 = vld [vmem:[%s3 + $0x28] sm:$0xf]
    %v246 = vld [vmem:[%s3 + $0x2c] sm:$0xf]
    %v247 = vld [vmem:[%s3 + $0x30] sm:$0xf]
    %v248 = vld [vmem:[%s3 + $0x34] sm:$0xf]
    %v249 = vld [vmem:[%s3 + $0x38] sm:$0xf]
    %v250 = vld [vmem:[%s3 + $0x3c] sm:$0xf]
    %v251 = vld [vmem:[%s4] sm:$0x1]
    %v253 = vlaneseq
    %v254 = vshrl.u32 %v253, 7
    %v255 = vsub.s32 0, %v254
    %v256 = vrot.slane %v251, %v255
    %v274 = vunpack.c.l.b16 %v235
    %v275 = vunpack.c.l.b16 %v236
    %v276 = vunpack.c.l.b16 %v237
    %v277 = vunpack.c.l.b16 %v238
    %v278 = vunpack.c.l.b16 %v239
    %v279 = vunpack.c.l.b16 %v240
    %v280 = vunpack.c.l.b16 %v241
    %v281 = vunpack.c.l.b16 %v242
    %v282 = vunpack.c.l.b16 %v243
    %v283 = vunpack.c.l.b16 %v244
    %v284 = vunpack.c.l.b16 %v245
    %v285 = vunpack.c.l.b16 %v246
    %v286 = vunpack.c.l.b16 %v247
    %v287 = vunpack.c.l.b16 %v248
    %v288 = vunpack.c.l.b16 %v249
    %v289 = vunpack.c.l.b16 %v250
    %v290 = vpack.c.b16 %v275, %v274
    %v291 = vpack.c.b16 %v277, %v276
    %v292 = vpack.c.b16 %v279, %v278
    %v293 = vpack.c.b16 %v281, %v280
    %v294 = vpack.c.b16 %v283, %v282
    %v295 = vpack.c.b16 %v285, %v284
    %v296 = vpack.c.b16 %v287, %v286
    %v297 = vpack.c.b16 %v289, %v288
    %306 = vmatprep.subr.bf16.mxu0 0
    %307 = vmatpush1.bf16.msra.mxu0 %v290
    %308 = vmatprep.subr.bf16.mxu0 0
    %309 = vmatpush1.bf16.msra.mxu0 %v291
    %310 = vmatprep.subr.bf16.mxu0 0
    %311 = vmatpush1.bf16.msra.mxu0 %v292
    %312 = vmatprep.subr.bf16.mxu0 0
    %313 = vmatpush1.bf16.msra.mxu0 %v293
    %314 = vmatprep.subr.bf16.mxu0 0
    %315 = vmatpush1.bf16.msra.mxu0 %v294
    %316 = vmatprep.subr.bf16.mxu0 0
    %317 = vmatpush1.bf16.msra.mxu0 %v295
    %318 = vmatprep.subr.bf16.mxu0 0
    %319 = vmatpush1.bf16.msra.mxu0 %v296
    %320 = vmatprep.subr.bf16.mxu0 0
    %321 = vmatpush1.bf16.msra.mxu0 %v297
    %322 = vmatprep.subr.bf16.mxu0 0
    %323 = vmatpush1.bf16.msra.mxu0 0
    %324 = vmatprep.subr.bf16.mxu0 0
    %325 = vmatpush1.bf16.msra.mxu0 0
    %326 = vmatprep.subr.bf16.mxu0 0
    %327 = vmatpush1.bf16.msra.mxu0 0
    %328 = vmatprep.subr.bf16.mxu0 0
    %329 = vmatpush1.bf16.msra.mxu0 0
    %330 = vmatprep.subr.bf16.mxu0 0
    %331 = vmatpush1.bf16.msra.mxu0 0
    %332 = vmatprep.subr.bf16.mxu0 0
    %333 = vmatpush1.bf16.msra.mxu0 0
    %334 = vmatprep.subr.bf16.mxu0 0
    %335 = vmatpush1.bf16.msra.mxu0 0
    %336 = vmatprep.subr.bf16.mxu0 0
    %337 = vmatpush1.bf16.msra.mxu0 0
    %338 = vmatprep.mubr.bf16.mxu0 0
    %339 = vmatmul.mubr.bf16.gmra.mrb[0].mxu0 %v234
    %v340 = vpop.f32.mrb[0].mxu0
    %v341 = vadd.f32 %v256, %v340
    %v342 = vpop.f32.mrb[0].mxu0
    %v343 = vpop.f32.mrb[0].mxu0
    %v344 = vpop.f32.mrb[0].mxu0
    %345 = vdwg.mxu0
    %v346 = vmul.f32 %v341, 0.5
    %v347 = vmul.f32 %v341, %v341
    %v348 = vmul.f32 %v347, %v341
    %v349 = vmul.f32 %v348, 0.044715
    %v350 = vadd.f32 %v341, %v349
    %v351 = vmul.f32 %v350, 0.7978846
    %v352 = vtanh.pop %v351
    %v353 = vadd.f32 %v352, 1.0
    %v354 = vmul.f32 %v346, %v353
    %v355 = vpack.c.bf16 %v354, %v354
    %v356 = vld [vmem:[%s5] sm:$0xf]
    %v357 = vld [vmem:[%s5 + $0x4] sm:$0xf]
    %v358 = vld [vmem:[%s5 + $0x8] sm:$0xf]
    %v359 = vld [vmem:[%s5 + $0xc] sm:$0xf]
    %v360 = vld [vmem:[%s5 + $0x10] sm:$0xf]
    %v361 = vld [vmem:[%s5 + $0x14] sm:$0xf]
    %v362 = vld [vmem:[%s5 + $0x18] sm:$0xf]
    %v363 = vld [vmem:[%s5 + $0x1c] sm:$0xf]
    %v364 = vld [vmem:[%s6] sm:$0x1]
    %v366 = vlaneseq
    %v367 = vshrl.u32 %v366, 7
    %v368 = vsub.s32 0, %v367
    %v369 = vrot.slane %v364, %v368
    %v379 = vunpack.c.l.b16 %v356
    %v380 = vunpack.c.l.b16 %v357
    %v381 = vunpack.c.l.b16 %v358
    %v382 = vunpack.c.l.b16 %v359
    %v383 = vunpack.c.l.b16 %v360
    %v384 = vunpack.c.l.b16 %v361
    %v385 = vunpack.c.l.b16 %v362
    %v386 = vunpack.c.l.b16 %v363
    %v387 = vpack.c.b16 %v380, %v379
    %v388 = vpack.c.b16 %v382, %v381
    %v389 = vpack.c.b16 %v384, %v383
    %v390 = vpack.c.b16 %v386, %v385
    %vm395 = vcmask 523264
    %v397 = vsel %vm395, %v355, 0
    %399 = vmatprep.subr.bf16.mxu0 0
    %400 = vmatpush1.bf16.msra.mxu0 %v387
    %401 = vmatprep.subr.bf16.mxu0 0
    %402 = vmatpush1.bf16.msra.mxu0 %v388
    %403 = vmatprep.subr.bf16.mxu0 0
    %404 = vmatpush1.bf16.msra.mxu0 %v389
    %405 = vmatprep.subr.bf16.mxu0 0
    %406 = vmatpush1.bf16.msra.mxu0 %v390
    %407 = vmatprep.subr.bf16.mxu0 0
    %408 = vmatpush1.bf16.msra.mxu0 0
    %409 = vmatprep.subr.bf16.mxu0 0
    %410 = vmatpush1.bf16.msra.mxu0 0
    %411 = vmatprep.subr.bf16.mxu0 0
    %412 = vmatpush1.bf16.msra.mxu0 0
    %413 = vmatprep.subr.bf16.mxu0 0
    %414 = vmatpush1.bf16.msra.mxu0 0
    %415 = vmatprep.subr.bf16.mxu0 0
    %416 = vmatpush1.bf16.msra.mxu0 0
    %417 = vmatprep.subr.bf16.mxu0 0
    %418 = vmatpush1.bf16.msra.mxu0 0
    %419 = vmatprep.subr.bf16.mxu0 0
    %420 = vmatpush1.bf16.msra.mxu0 0
    %421 = vmatprep.subr.bf16.mxu0 0
    %422 = vmatpush1.bf16.msra.mxu0 0
    %423 = vmatprep.subr.bf16.mxu0 0
    %424 = vmatpush1.bf16.msra.mxu0 0
    %425 = vmatprep.subr.bf16.mxu0 0
    %426 = vmatpush1.bf16.msra.mxu0 0
    %427 = vmatprep.subr.bf16.mxu0 0
    %428 = vmatpush1.bf16.msra.mxu0 0
    %429 = vmatprep.subr.bf16.mxu0 0
    %430 = vmatpush1.bf16.msra.mxu0 0
    %431 = vmatprep.mubr.bf16.mxu0 0
    %432 = vmatmul.mubr.bf16.gmra.mrb[0].mxu0 %v397
    %v433 = vpop.f32.mrb[0].mxu0
    %v434 = vadd.f32 %v369, %v433
    %v435 = vpop.f32.mrb[0].mxu0
    %v436 = vpop.f32.mrb[0].mxu0
    %v437 = vpop.f32.mrb[0].mxu0
    %438 = vdwg.mxu0
    %v439 = vmul.f32 %v434, 0.5
    %v440 = vmul.f32 %v434, %v434
    %v441 = vmul.f32 %v440, %v434
    %v442 = vmul.f32 %v441, 0.044715
    %v443 = vadd.f32 %v434, %v442
    %v444 = vmul.f32 %v443, 0.7978846
    %v445 = vtanh.pop %v444
    %v446 = vadd.f32 %v445, 1.0
    %v447 = vmul.f32 %v439, %v446
    %v448 = vpack.c.bf16 %v447, %v447
    %v449 = vld [vmem:[%s7] sm:$0xf]
    %v450 = vld [vmem:[%s7 + $0x4] sm:$0xf]
    %v451 = vld [vmem:[%s7 + $0x8] sm:$0xf]
    %v452 = vld [vmem:[%s7 + $0xc] sm:$0xf]
    %v453 = vld [vmem:[%s8] sm:$0x1]
    %v455 = vlaneseq
    %v456 = vshrl.u32 %v455, 7
    %v457 = vsub.s32 0, %v456
    %v458 = vrot.slane %v453, %v457
    %v464 = vunpack.c.l.b16 %v449
    %v465 = vunpack.c.l.b16 %v450
    %v466 = vunpack.c.l.b16 %v451
    %v467 = vunpack.c.l.b16 %v452
    %v468 = vpack.c.b16 %v465, %v464
    %v469 = vpack.c.b16 %v467, %v466
    %vm472 = vcmask 261120
    %v474 = vsel %vm472, %v448, 0
    %476 = vmatprep.subr.bf16.mxu0 0
    %477 = vmatpush1.bf16.msra.mxu0 %v468
    %478 = vmatprep.subr.bf16.mxu0 0
    %479 = vmatpush1.bf16.msra.mxu0 %v469
    %480 = vmatprep.subr.bf16.mxu0 0
    %481 = vmatpush1.bf16.msra.mxu0 0
    %482 = vmatprep.subr.bf16.mxu0 0
    %483 = vmatpush1.bf16.msra.mxu0 0
    %484 = vmatprep.subr.bf16.mxu0 0
    %485 = vmatpush1.bf16.msra.mxu0 0
    %486 = vmatprep.subr.bf16.mxu0 0
    %487 = vmatpush1.bf16.msra.mxu0 0
    %488 = vmatprep.subr.bf16.mxu0 0
    %489 = vmatpush1.bf16.msra.mxu0 0
    %490 = vmatprep.subr.bf16.mxu0 0
    %491 = vmatpush1.bf16.msra.mxu0 0
    %492 = vmatprep.subr.bf16.mxu0 0
    %493 = vmatpush1.bf16.msra.mxu0 0
    %494 = vmatprep.subr.bf16.mxu0 0
    %495 = vmatpush1.bf16.msra.mxu0 0
    %496 = vmatprep.subr.bf16.mxu0 0
    %497 = vmatpush1.bf16.msra.mxu0 0
    %498 = vmatprep.subr.bf16.mxu0 0
    %499 = vmatpush1.bf16.msra.mxu0 0
    %500 = vmatprep.subr.bf16.mxu0 0
    %501 = vmatpush1.bf16.msra.mxu0 0
    %502 = vmatprep.subr.bf16.mxu0 0
    %503 = vmatpush1.bf16.msra.mxu0 0
    %504 = vmatprep.subr.bf16.mxu0 0
    %505 = vmatpush1.bf16.msra.mxu0 0
    %506 = vmatprep.subr.bf16.mxu0 0
    %507 = vmatpush1.bf16.msra.mxu0 0
    %508 = vmatprep.mubr.bf16.mxu0 0
    %509 = vmatmul.mubr.bf16.gmra.mrb[0].mxu0 %v474
    %v510 = vpop.f32.mrb[0].mxu0
    %v511 = vadd.f32 %v458, %v510
    %v512 = vpop.f32.mrb[0].mxu0
    %v513 = vpop.f32.mrb[0].mxu0
    %v514 = vpop.f32.mrb[0].mxu0
    %515 = vdwg.mxu0
    %vm516 = vcmask 130048
    %517 = vst.msk [vmem:[#allocation5] sm:$0xff] %vm516, %v511
    // Predicated region
    $region42: #{tpu_custom_call.1} parent=1 // pred_check
      _
    $region43: #{tpu_custom_call.1} parent=1 // pred_check_branch
      %519 = sbr.rel (0) target = $region45
    $region44: #{tpu_custom_call.1} parent=1 // pred_region
      %s521 = ssub.s32 128, 128
      %522 = vsyncadd [#allocation4], %s521
      %s524 = sshll.u32 [#allocation5], 4
      %s525 = int_to_ptr.vmem [resolvable:$true] %s524
      %527 = dma.vmem_to_hbm [thread:$0]  %s525, 128, %s9, [#allocation4]
    $region45: #{tpu_custom_call.1} parent=1 // pred_fallthru
      _
    // Predicated region
    $region46: #{tpu_custom_call.1} parent=1 // pred_check
      _
    $region47: #{tpu_custom_call.1} parent=1 // pred_check_branch
      %529 = sbr.rel (0) target = $region49
    $region48: #{tpu_custom_call.1} parent=1 // pred_region
      %530 = dma.done [#allocation4], 128
    $region49: #{tpu_custom_call.1} parent=1 // pred_fallthru
      _
    %531 = vsyncpa [#allocation3], 1
    %532 = vsyncpa [#allocation4], 1

</llo_original>
